<compile_context>
chip_gen: v5e
topology: v5e:2x2
jax: 0.10.0
libtpu: 0.0.40
codegen_flags: <defaults>
</compile_context>

<pallas_src>
from math import log, sqrt

import jax
import jax.numpy as jnp
from jax.experimental import pallas as pl
from jax.experimental.pallas import tpu as pltpu

SHIFT = log(2.0)  # ShiftedSoftplus shift


def _round_up(x, m):
    return ((x + m - 1) // m) * m


def _tpu_hw():
    """Best-effort per-generation hardware info with robust fallbacks.

    Returns (vmem_capacity_bytes_per_tc, num_tensorcores, is_v7x).
    """
    kind = ""
    try:
        kind = jax.devices()[0].device_kind.lower()
    except Exception:
        pass
    is_v7 = ("v7" in kind) or ("tpu7" in kind)

    vmem_cap = None
    try:
        vmem_cap = int(pltpu.get_tpu_info().vmem_capacity_bytes)
    except Exception:
        vmem_cap = None
    if not vmem_cap or vmem_cap <= 0:
        # v7x: 64 MiB per TensorCore; v5e/v6e: 128 MiB.
        vmem_cap = (64 if is_v7 else 128) * 1024 * 1024

    num_tc = 2 if is_v7 else 1  # only v7x has 2 TensorCores per chip
    return vmem_cap, num_tc, is_v7


def _update_u_kernel(batch_ref, v_ref, w1_ref, b1_ref, w2_ref, b2_ref, u_ref):
    """One grid step processes a tile of nodes and accumulates into u.

    batch_ref: (1, tn) int32   graph index per node (lane-major)
    v_ref:     (tn, H)         node features (f32 or bf16)
    w1_ref:    (H, H//2)       lin1 weight, pre-transposed to (in, out)
    b1_ref:    (1, H//2) f32
    w2_ref:    (H//2, O)       lin2 weight, pre-transposed
    b2_ref:    (1, O)   f32
    u_ref:     (G, O)   f32    per-split persistent accumulator (output)
    """
    i = pl.program_id(1)  # node-tile step within this core-split

    @pl.when(i == 0)
    def _():
        u_ref[...] = jnp.zeros_like(u_ref)

    # lin1 (bf16 or f32 operands, f32 accumulation on the MXU) + shifted softplus
    h = jnp.dot(v_ref[...], w1_ref[...],
                preferred_element_type=jnp.float32) + b1_ref[...]
    h = jnp.maximum(h, 0.0) + jnp.log1p(jnp.exp(-jnp.abs(h))) - SHIFT

    # lin2 (h stays f32; a bf16 w2 is promoted -> exact f32 accumulate)
    y = jnp.dot(h, w2_ref[...], preferred_element_type=jnp.float32) + b2_ref[...]

    # scatter-add by graph id, expressed as a one-hot matmul on the MXU:
    #   u[g, :] += sum_{n : batch[n] == g} y[n, :]
    # The (G, 1) iota column broadcast-compares against the lane-major (1, tn)
    # batch row (pure VPU work, no VMEM scratch); out-of-range padding ids
    # never match any graph, so padded rows drop out.
    num_graphs = u_ref.shape[0]
    gids = jax.lax.broadcasted_iota(jnp.int32, (num_graphs, 1), 0)     # (G, 1)
    onehot = (gids == batch_ref[...]).astype(jnp.float32)              # (G, tn)
    u_ref[...] += jnp.dot(onehot, y, preferred_element_type=jnp.float32)


def update_u_pallas(v, batch, w1_t, b1, w2_t, b2, num_graphs, *,
                    tile_n=None, num_splits=None):
    """v: (N, H) f32/bf16, batch: (N,) int, returns (num_graphs, out) f32.

    Recommended call path: v / w1_t / w2_t in bf16 (the kernel is HBM-bound on
    the v stream; accumulation stays f32 so accuracy cost is just the cast).
    """
    n, hidden = v.shape
    half = w1_t.shape[1]
    out = w2_t.shape[1]

    vmem_cap, num_tc, is_v7 = _tpu_hw()

    # --- per-generation defaults ----------------------------------------------
    # Split the node reduction across TensorCores only where a second TC exists
    # (v7x); on v5e/v6e a leading split is a serial loop plus pure overhead.
    if num_splits is None:
        num_splits = num_tc
    if tile_n is None:
        if is_v7:
            tile_n = 4096 if hidden <= 256 else 2048   # 3.2 TB/s HBM -> bigger tiles
        else:
            tile_n = 1024
    if num_graphs > 256:
        # Keep the dense (G, tile_n) one-hot from dominating the VPU.
        # TODO(synk): replace with a scalar-prefetched windowed scatter and
        # remove this cap for large, sorted-batch graphs.
        tile_n = min(tile_n, 512)

    per_split = -(-n // num_splits)
    tile_n = min(tile_n, _round_up(per_split, 128))
    tile_n = max(128, _round_up(tile_n, 128))      # lane-major batch block => x128

    n_pad = _round_up(n, tile_n * num_splits)
    steps_per_split = n_pad // (tile_n * num_splits)

    # --- pad N; padded rows carry an out-of-range graph id so they drop out ---
    batch = batch.astype(jnp.int32)
    if n_pad != n:
        v = jnp.pad(v, ((0, n_pad - n), (0, 0)))
        batch = jnp.concatenate(
            [batch, jnp.full((n_pad - n,), num_graphs, jnp.int32)])

    batch_row = batch.reshape(1, n_pad)            # lane-major batch ids
    b1_2d = b1.reshape(1, half).astype(jnp.float32)
    b2_2d = b2.reshape(1, out).astype(jnp.float32)

    # --- VMEM budget (counts BlockSpec double-buffering on every input/output)
    elem_v = jnp.dtype(v.dtype).itemsize
    elem_w = jnp.dtype(w1_t.dtype).itemsize
    vmem_needed = (
        2 * tile_n * hidden * elem_v                    # v stream, double-buffered
        + 2 * tile_n * 4                                # batch row, double-buffered
        + 2 * (hidden * half + half * out) * elem_w     # resident weights (2 copies)
        + 2 * (half + out) * 4                          # resident biases (2 copies)
        + 2 * num_graphs * out * 4                      # accumulator output block
        + num_graphs * tile_n * 4                       # one-hot f32 temporary
        + tile_n * (half + out) * 4                     # h / y f32 temporaries
    )
    # Always set the scoped limit: >= the per-generation default (floor), with
    # ~30% headroom over the estimate, capped below physical per-TC VMEM.
    floor = min(32 * 1024 * 1024, vmem_cap // 2)
    vmem_limit = int(min(max(1.3 * vmem_needed, floor), 0.85 * vmem_cap))

    compiler_params = pltpu.CompilerParams(
        dimension_semantics=("parallel", "arbitrary"),
        vmem_limit_bytes=vmem_limit,
    )

    grid = (num_splits, steps_per_split)

    u_parts = pl.pallas_call(
        _update_u_kernel,
        out_shape=jax.ShapeDtypeStruct((num_splits, num_graphs, out),
                                       jnp.float32),
        grid_spec=pltpu.PrefetchScalarGridSpec(
            num_scalar_prefetch=0,
            grid=grid,
            in_specs=[
                # batch ids, lane-major
                pl.BlockSpec((1, tile_n),
                             lambda c, i: (0, c * steps_per_split + i)),
                # v node tile (the only real HBM stream)
                pl.BlockSpec((tile_n, hidden),
                             lambda c, i: (c * steps_per_split + i, 0)),
                # parameters stay resident (constant index maps => no re-DMA)
                pl.BlockSpec((hidden, half), lambda c, i: (0, 0)),
                pl.BlockSpec((1, half), lambda c, i: (0, 0)),
                pl.BlockSpec((half, out), lambda c, i: (0, 0)),
                pl.BlockSpec((1, out), lambda c, i: (0, 0)),
            ],
            out_specs=pl.BlockSpec((None, num_graphs, out),
                                   lambda c, i: (c, 0, 0)),
        ),
        compiler_params=compiler_params,
    )(batch_row, v, w1_t, b1_2d, w2_t, b2_2d)

    # Tiny cross-core reduction of the per-split partial accumulators
    # (num_splits == 1 everywhere except v7x, so this is usually a no-op sum).
    return u_parts.sum(axis=0)


def _xavier_uniform(key, fan_out, fan_in):
    bound = sqrt(6.0 / (fan_in + fan_out))
    return jax.random.uniform(
        key, (fan_out, fan_in), jnp.float32, minval=-bound, maxval=bound
    )


def _reference(v, batch, w1_t, b1, w2_t, b2, num_graphs):
    v = v.astype(jnp.float32)
    h = v @ w1_t.astype(jnp.float32) + b1.astype(jnp.float32)
    h = jnp.maximum(h, 0.0) + jnp.log1p(jnp.exp(-jnp.abs(h))) - SHIFT
    y = h @ w2_t.astype(jnp.float32) + b2.astype(jnp.float32)
    return jax.ops.segment_sum(y, batch, num_segments=num_graphs)


if __name__ == "__main__":
    hidden_channels = 32
    out_channels = 8
    n_nodes = 16
    num_graphs = 4

    key = jax.random.PRNGKey(0)
    k_v, k_w1, k_w2, k_b = jax.random.split(key, 4)

    # Node features and graph assignment (any node order is fine).
    v = jax.random.normal(k_v, (n_nodes, hidden_channels), jnp.float32)
    batch = jnp.sort(
        jax.random.randint(k_b, (n_nodes,), 0, num_graphs, dtype=jnp.int32)
    )

    # Deterministic parameter init matching the PyTorch module's __init__:
    # lin1: (hidden//2, hidden) xavier_uniform, bias 0
    # lin2: (out, hidden//2)    xavier_uniform, bias 0
    w1 = _xavier_uniform(k_w1, hidden_channels // 2, hidden_channels)
    b1 = jnp.zeros((hidden_channels // 2,), jnp.float32)
    w2 = _xavier_uniform(k_w2, out_channels, hidden_channels // 2)
    b2 = jnp.zeros((out_channels,), jnp.float32)

    # Pre-transpose weights to (in, out) for the kernel's row-major matmuls.
    w1_t, w2_t = w1.T, w2.T

    # --- f32 path (exact parity with the PyTorch module) ----------------------
    u = jax.block_until_ready(
        update_u_pallas(v, batch, w1_t, b1, w2_t, b2, num_graphs))
    u_ref = _reference(v, batch, w1_t, b1, w2_t, b2, num_graphs)
    assert u.shape == (num_graphs, out_channels)
    assert jnp.allclose(u, u_ref, atol=1e-5, rtol=1e-5)

    # --- bf16 feature/weight stream (recommended: kernel is HBM-bound) --------
    v_bf = v.astype(jnp.bfloat16)
    w1_bf = w1_t.astype(jnp.bfloat16)
    w2_bf = w2_t.astype(jnp.bfloat16)
    u_bf = jax.block_until_ready(
        update_u_pallas(v_bf, batch, w1_bf, b1, w2_bf, b2, num_graphs))
    u_bf_ref = _reference(v_bf, batch, w1_bf, b1, w2_bf, b2, num_graphs)
    assert u_bf.shape == (num_graphs, out_channels)
    assert jnp.allclose(u_bf, u_bf_ref, atol=5e-2, rtol=5e-2)

    print("KERNEL_OK")
</pallas_src>

<mosaic_0001>
module attributes {stable_mosaic.version = 11 : i64} {
  func.func @_update_u_kernel(%arg0: i32, %arg1: i32, %arg2: memref<1x128xi32, #tpu.memory_space<vmem>>, %arg3: memref<128x32xf32, #tpu.memory_space<vmem>>, %arg4: memref<32x16xf32, #tpu.memory_space<vmem>>, %arg5: memref<1x16xf32, #tpu.memory_space<vmem>>, %arg6: memref<16x8xf32, #tpu.memory_space<vmem>>, %arg7: memref<1x8xf32, #tpu.memory_space<vmem>>, %arg8: memref<1x4x8xf32, #tpu.memory_space<vmem>>) attributes {dimension_semantics = [#tpu.dimension_semantics<parallel>, #tpu.dimension_semantics<arbitrary>], iteration_bounds = array<i64: 1, 1>, scalar_prefetch = 0 : i64, scratch_operands = 0 : i64, tpu.core_type = #tpu.core_type<tc>, window_params = [{transform_indices = @transform_0, window_bounds = array<i64: 1, 128>}, {transform_indices = @transform_1, window_bounds = array<i64: 128, 32>}, {pipeline_mode = #tpu.pipeline_mode<synchronous>, transform_indices = @transform_2, window_bounds = array<i64: 32, 16>}, {pipeline_mode = #tpu.pipeline_mode<synchronous>, transform_indices = @transform_3, window_bounds = array<i64: 1, 16>}, {pipeline_mode = #tpu.pipeline_mode<synchronous>, transform_indices = @transform_4, window_bounds = array<i64: 16, 8>}, {pipeline_mode = #tpu.pipeline_mode<synchronous>, transform_indices = @transform_5, window_bounds = array<i64: 1, 8>}, {transform_indices = @transform_6, window_bounds = array<i64: 1, 4, 8>}]} {
    %c0_i32 = arith.constant 0 : i32
    %0 = arith.cmpi eq, %arg1, %c0_i32 : i32
    %1 = arith.extui %0 : i1 to i32
    %c0_i32_0 = arith.constant 0 : i32
    %2 = arith.cmpi ne, %1, %c0_i32_0 : i32
    scf.if %2 {
      %cst_23 = arith.constant 0.000000e+00 : f32
      %38 = vector.broadcast %cst_23 : f32 to vector<4x8xf32>
      %c0_24 = arith.constant 0 : index
      %c0_25 = arith.constant 0 : index
      %c0_26 = arith.constant 0 : index
      %39 = vector.load %arg8[%c0_24, %c0_25, %c0_26] : memref<1x4x8xf32, #tpu.memory_space<vmem>>, vector<1x4x8xf32>
      %40 = vector.shape_cast %39 : vector<1x4x8xf32> to vector<4x8xf32>
      %41 = vector.shape_cast %38 : vector<4x8xf32> to vector<1x4x8xf32>
      tpu.vector_store %arg8[%c0_24, %c0_25, %c0_26], %41 {strides = array<i32>} : memref<1x4x8xf32, #tpu.memory_space<vmem>>, vector<1x4x8xf32>,
    } else {
    }
    %c0 = arith.constant 0 : index
    %c0_1 = arith.constant 0 : index
    %3 = vector.load %arg3[%c0, %c0_1] : memref<128x32xf32, #tpu.memory_space<vmem>>, vector<128x32xf32>
    %c0_2 = arith.constant 0 : index
    %c0_3 = arith.constant 0 : index
    %4 = vector.load %arg4[%c0_2, %c0_3] : memref<32x16xf32, #tpu.memory_space<vmem>>, vector<32x16xf32>
    %cst = arith.constant dense<0.000000e+00> : vector<128x16xf32>
    %5 = tpu.matmul %3, %4, %cst {dimension_numbers = #tpu.dot_dimension_numbers<[1], [0], [0], [1], [0, 0, 1, 1], [], []>} : vector<128x32xf32>, vector<32x16xf32>, vector<128x16xf32> -> vector<128x16xf32>
    %c0_4 = arith.constant 0 : index
    %c0_5 = arith.constant 0 : index
    %6 = vector.load %arg5[%c0_4, %c0_5] : memref<1x16xf32, #tpu.memory_space<vmem>>, vector<1x16xf32>
    %7 = vector.broadcast %6 : vector<1x16xf32> to vector<128x16xf32>
    %8 = arith.addf %5, %7 : vector<128x16xf32>
    %cst_6 = arith.constant 0.000000e+00 : f32
    %9 = vector.broadcast %cst_6 : f32 to vector<128x16xf32>
    %10 = arith.maximumf %8, %9 : vector<128x16xf32>
    %11 = math.absf %8 : vector<128x16xf32>
    %cst_7 = arith.constant 0.000000e+00 : f32
    %12 = vector.broadcast %cst_7 : f32 to vector<128x16xf32>
    %13 = arith.subf %12, %11 : vector<128x16xf32>
    %14 = math.exp %13 : vector<128x16xf32>
    %15 = math.log1p %14 : vector<128x16xf32>
    %16 = arith.addf %10, %15 : vector<128x16xf32>
    %cst_8 = arith.constant 0.693147182 : f32
    %17 = vector.broadcast %cst_8 : f32 to vector<128x16xf32>
    %18 = arith.subf %16, %17 : vector<128x16xf32>
    %c0_9 = arith.constant 0 : index
    %c0_10 = arith.constant 0 : index
    %19 = vector.load %arg6[%c0_9, %c0_10] : memref<16x8xf32, #tpu.memory_space<vmem>>, vector<16x8xf32>
    %cst_11 = arith.constant dense<0.000000e+00> : vector<128x8xf32>
    %20 = tpu.matmul %18, %19, %cst_11 {dimension_numbers = #tpu.dot_dimension_numbers<[1], [0], [0], [1], [0, 0, 1, 1], [], []>} : vector<128x16xf32>, vector<16x8xf32>, vector<128x8xf32> -> vector<128x8xf32>
    %c0_12 = arith.constant 0 : index
    %c0_13 = arith.constant 0 : index
    %21 = vector.load %arg7[%c0_12, %c0_13] : memref<1x8xf32, #tpu.memory_space<vmem>>, vector<1x8xf32>
    %22 = vector.broadcast %21 : vector<1x8xf32> to vector<128x8xf32>
    %23 = arith.addf %20, %22 : vector<128x8xf32>
    %24 = tpu.iota {dimensions = array<i32: 0>} : vector<4x1xi32>
    %c0_14 = arith.constant 0 : index
    %c0_15 = arith.constant 0 : index
    %25 = vector.load %arg2[%c0_14, %c0_15] : memref<1x128xi32, #tpu.memory_space<vmem>>, vector<1x128xi32>
    %26 = vector.broadcast %24 : vector<4x1xi32> to vector<4x128xi32>
    %27 = vector.broadcast %25 : vector<1x128xi32> to vector<4x128xi32>
    %28 = arith.cmpi eq, %26, %27 : vector<4x128xi32>
    %29 = arith.extui %28 : vector<4x128xi1> to vector<4x128xi32>
    %30 = arith.sitofp %29 : vector<4x128xi32> to vector<4x128xf32>
    %c0_16 = arith.constant 0 : index
    %c0_17 = arith.constant 0 : index
    %c0_18 = arith.constant 0 : index
    %31 = vector.load %arg8[%c0_16, %c0_17, %c0_18] : memref<1x4x8xf32, #tpu.memory_space<vmem>>, vector<1x4x8xf32>
    %32 = vector.shape_cast %31 : vector<1x4x8xf32> to vector<4x8xf32>
    %cst_19 = arith.constant dense<0.000000e+00> : vector<4x8xf32>
    %33 = tpu.matmul %30, %23, %cst_19 {dimension_numbers = #tpu.dot_dimension_numbers<[1], [0], [0], [1], [0, 0, 1, 1], [], []>} : vector<4x128xf32>, vector<128x8xf32>, vector<4x8xf32> -> vector<4x8xf32>
    %34 = arith.addf %32, %33 : vector<4x8xf32>
    %c0_20 = arith.constant 0 : index
    %c0_21 = arith.constant 0 : index
    %c0_22 = arith.constant 0 : index
    %35 = vector.load %arg8[%c0_20, %c0_21, %c0_22] : memref<1x4x8xf32, #tpu.memory_space<vmem>>, vector<1x4x8xf32>
    %36 = vector.shape_cast %35 : vector<1x4x8xf32> to vector<4x8xf32>
    %37 = vector.shape_cast %34 : vector<4x8xf32> to vector<1x4x8xf32>
    tpu.vector_store %arg8[%c0_20, %c0_21, %c0_22], %37 {strides = array<i32>} : memref<1x4x8xf32, #tpu.memory_space<vmem>>, vector<1x4x8xf32>,
    return
  }
  func.func @transform_0(%arg0: i32, %arg1: i32) -> (i32, i32) {
    %c1_i32 = arith.constant 1 : i32
    %0 = arith.muli %arg0, %c1_i32 : i32
    %1 = arith.addi %0, %arg1 : i32
    %c0_i32 = arith.constant 0 : i32
    %c0_i32_0 = arith.constant 0 : i32
    return %c0_i32, %1 : i32, i32
  }
  func.func @transform_1(%arg0: i32, %arg1: i32) -> (i32, i32) {
    %c1_i32 = arith.constant 1 : i32
    %0 = arith.muli %arg0, %c1_i32 : i32
    %1 = arith.addi %0, %arg1 : i32
    %c0_i32 = arith.constant 0 : i32
    %c0_i32_0 = arith.constant 0 : i32
    return %1, %c0_i32 : i32, i32
  }
  func.func @transform_2(%arg0: i32, %arg1: i32) -> (i32, i32) {
    %c0_i32 = arith.constant 0 : i32
    %c0_i32_0 = arith.constant 0 : i32
    %c0_i32_1 = arith.constant 0 : i32
    return %c0_i32, %c0_i32_0 : i32, i32
  }
  func.func @transform_3(%arg0: i32, %arg1: i32) -> (i32, i32) {
    %c0_i32 = arith.constant 0 : i32
    %c0_i32_0 = arith.constant 0 : i32
    %c0_i32_1 = arith.constant 0 : i32
    return %c0_i32, %c0_i32_0 : i32, i32
  }
  func.func @transform_4(%arg0: i32, %arg1: i32) -> (i32, i32) {
    %c0_i32 = arith.constant 0 : i32
    %c0_i32_0 = arith.constant 0 : i32
    %c0_i32_1 = arith.constant 0 : i32
    return %c0_i32, %c0_i32_0 : i32, i32
  }
  func.func @transform_5(%arg0: i32, %arg1: i32) -> (i32, i32) {
    %c0_i32 = arith.constant 0 : i32
    %c0_i32_0 = arith.constant 0 : i32
    %c0_i32_1 = arith.constant 0 : i32
    return %c0_i32, %c0_i32_0 : i32, i32
  }
  func.func @transform_6(%arg0: i32, %arg1: i32) -> (i32, i32, i32) {
    %c0_i32 = arith.constant 0 : i32
    %c0_i32_0 = arith.constant 0 : i32
    %c0_i32_1 = arith.constant 0 : i32
    return %arg0, %c0_i32, %c0_i32_0 : i32, i32, i32
  }
}

</mosaic_0001>

<llo_original>
// kernel: tpu_custom_call.1
$region0: #{tpu_custom_call.1}
  #allocation0 [shape = 'u32[]', space=smem, size = 0x4, offset = 0x4, fixed_abs, tag = 'smem constant byte address 0x4 - core index']
  #allocation1 [shape = 'u32[72,128]{1,0:T(1,128)}', space=vmem, size = 0x9000, scoped, tag = 'internal scratch']
  %s0 = inlined_call_operand.vmem [shape: s32[1,128], index: 0, kind: input, shape index: {}]
  %s1 = inlined_call_operand.vmem [shape: f32[128,32], index: 1, kind: input, shape index: {}]
  %s2 = inlined_call_operand.vmem [shape: f32[32,16], index: 2, kind: input, shape index: {}]
  %s3 = inlined_call_operand.vmem [shape: f32[1,16], index: 3, kind: input, shape index: {}]
  %s4 = inlined_call_operand.vmem [shape: f32[16,8], index: 4, kind: input, shape index: {}]
  %s5 = inlined_call_operand.vmem [shape: f32[1,8], index: 5, kind: input, shape index: {}]
  %s6 = inlined_call_operand.hbm [shape: f32[1,4,8], index: 6, kind: output, shape index: {}]
  %s7 = sld [smem:[#allocation0]]
  $region38: #{tpu_custom_call.1} parent=0
    _
  %s9 = ssub.s32 1, %s7
  %s10 = scalar_select 0, %s9, %s7
  $region1: #{tpu_custom_call.1} parent=0
    #allocation2 [shape = 'u8[2048]{0}', space=vmem, size = 0x800, scoped, tag = 'output window, operand 0, single buffered']
    #allocation3 [shape = 's32[1]{0}', space=sflag, size = 0x4, scoped, tag = 'scoped memory for tpu_custom_call.1']
    %11 = vsyncpa [#allocation3], 0
    // Predicated region
    $region2: #{tpu_custom_call.1} parent=1 // pred_check
      _
    $region3: #{tpu_custom_call.1} parent=1 // pred_check_branch
      %13 = sbr.rel (0) target = $region5
    $region4: #{tpu_custom_call.1} parent=1 // pred_region
      %s14 = sadd.s32 0, 0
      %p15 = scmp.lt.s32.totalorder %s14, 0
      %s16 = scalar_select %p15, %s14, 0
      %s17 = scalar_lea.vmem %s0, %s16
      %s18 = sadd.s32 0, 0
    $region5: #{tpu_custom_call.1} parent=1 // pred_fallthru
      _
    // Predicated region
    $region6: #{tpu_custom_call.1} parent=1 // pred_check
      _
    $region7: #{tpu_custom_call.1} parent=1 // pred_check_branch
      %20 = sbr.rel (0) target = $region9
    $region8: #{tpu_custom_call.1} parent=1 // pred_region
      %s21 = sadd.s32 0, 0
      %s22 = smul.u32 16, %s21
      %p23 = scmp.lt.s32.totalorder %s22, 15
      %s24 = scalar_select %p23, %s22, 15
      %s25 = smul.addr %s24, 8
      %s26 = scalar_lea.vmem %s1, %s25
      %s27 = sadd.s32 0, 0
      %s28 = smul.u32 16, %s27
    $region9: #{tpu_custom_call.1} parent=1 // pred_fallthru
      _
    // Predicated region
    $region10: #{tpu_custom_call.1} parent=1 // pred_check
      _
    $region11: #{tpu_custom_call.1} parent=1 // pred_check_branch
      %30 = sbr.rel (0) target = $region13
    $region12: #{tpu_custom_call.1} parent=1 // pred_region
      _
    $region13: #{tpu_custom_call.1} parent=1 // pred_fallthru
      _
    // Predicated region
    $region14: #{tpu_custom_call.1} parent=1 // pred_check
      _
    $region15: #{tpu_custom_call.1} parent=1 // pred_check_branch
      %32 = sbr.rel (0) target = $region17
    $region16: #{tpu_custom_call.1} parent=1 // pred_region
      _
    $region17: #{tpu_custom_call.1} parent=1 // pred_fallthru
      _
    // Predicated region
    $region18: #{tpu_custom_call.1} parent=1 // pred_check
      _
    $region19: #{tpu_custom_call.1} parent=1 // pred_check_branch
      %34 = sbr.rel (0) target = $region21
    $region20: #{tpu_custom_call.1} parent=1 // pred_region
      _
    $region21: #{tpu_custom_call.1} parent=1 // pred_fallthru
      _
    // Predicated region
    $region22: #{tpu_custom_call.1} parent=1 // pred_check
      _
    $region23: #{tpu_custom_call.1} parent=1 // pred_check_branch
      %36 = sbr.rel (0) target = $region25
    $region24: #{tpu_custom_call.1} parent=1 // pred_region
      _
    $region25: #{tpu_custom_call.1} parent=1 // pred_fallthru
      _
    %s37 = sadd.s32 0, 0
    %p38 = scmp.lt.s32.totalorder %s37, 0
    %s39 = scalar_select %p38, %s37, 0
    %s40 = scalar_lea.vmem %s0, %s39
    %s41 = sadd.s32 0, 0
    %s42 = smul.u32 16, %s41
    %p43 = scmp.lt.s32.totalorder %s42, 15
    %s44 = scalar_select %p43, %s42, 15
    %s45 = smul.addr %s44, 8
    %s46 = scalar_lea.vmem %s1, %s45
    %s47 = sadd.s32 0, 0
    %p48 = scmp.lt.s32.totalorder %s47, 0
    %s49 = scalar_select %p48, %s47, 0
    %s50 = scalar_lea.vmem %s0, %s49
    %s51 = sadd.s32 0, 0
    %s52 = sadd.s32 0, 0
    %s53 = smul.u32 16, %s52
    %p54 = scmp.lt.s32.totalorder %s53, 15
    %s55 = scalar_select %p54, %s53, 15
    %s56 = smul.addr %s55, 8
    %s57 = scalar_lea.vmem %s1, %s56
    %s58 = sadd.s32 0, 0
    %s59 = smul.u32 16, %s58
    %p60 = scmp.eq.s32.totalorder 0, 0
    // Predicated region
    $region26: #{tpu_custom_call.1} parent=1 // pred_check
      %p61 = pneg %p60
    $region27: #{tpu_custom_call.1} parent=1 // pred_check_branch
      %63 = sbr.rel (%p61) target = $region29
    $region28: #{tpu_custom_call.1} parent=1 // pred_region
      %vm64 = vcmask 60416
      %65 = vst.msk [vmem:[#allocation2] sm:$0xf] %vm64, 0.0
    $region29: #{tpu_custom_call.1} parent=1 // pred_fallthru
      _
    %v66 = vld [vmem:[%s57] sm:$0xff]
    %v67 = vld [vmem:[%s57 + $0x8] sm:$0xff]
    %v68 = vld [vmem:[%s57 + $0x10] sm:$0xff]
    %v69 = vld [vmem:[%s57 + $0x18] sm:$0xff]
    %v70 = vld [vmem:[%s57 + $0x20] sm:$0xff]
    %v71 = vld [vmem:[%s57 + $0x28] sm:$0xff]
    %v72 = vld [vmem:[%s57 + $0x30] sm:$0xff]
    %v73 = vld [vmem:[%s57 + $0x38] sm:$0xff]
    %v74 = vld [vmem:[%s57 + $0x40] sm:$0xff]
    %v75 = vld [vmem:[%s57 + $0x48] sm:$0xff]
    %v76 = vld [vmem:[%s57 + $0x50] sm:$0xff]
    %v77 = vld [vmem:[%s57 + $0x58] sm:$0xff]
    %v78 = vld [vmem:[%s57 + $0x60] sm:$0xff]
    %v79 = vld [vmem:[%s57 + $0x68] sm:$0xff]
    %v80 = vld [vmem:[%s57 + $0x70] sm:$0xff]
    %v81 = vld [vmem:[%s57 + $0x78] sm:$0xff]
    %v82 = vld [vmem:[%s2] sm:$0xff]
    %v83 = vld [vmem:[%s2 + $0x8] sm:$0xff]
    %v84 = vld [vmem:[%s2 + $0x10] sm:$0xff]
    %v85 = vld [vmem:[%s2 + $0x18] sm:$0xff]
    %v86 = vld [vmem:[%s3] sm:$0x1]
    %v88 = vperm.slane %v86, 0
    %vm90 = vcmask 261120
    %v92 = vsel %vm90, %v66, 0
    %v95 = vsel %vm90, %v67, 0
    %v98 = vsel %vm90, %v68, 0
    %v101 = vsel %vm90, %v69, 0
    %v104 = vsel %vm90, %v70, 0
    %v107 = vsel %vm90, %v71, 0
    %v110 = vsel %vm90, %v72, 0
    %v113 = vsel %vm90, %v73, 0
    %v116 = vsel %vm90, %v74, 0
    %v119 = vsel %vm90, %v75, 0
    %v122 = vsel %vm90, %v76, 0
    %v125 = vsel %vm90, %v77, 0
    %v128 = vsel %vm90, %v78, 0
    %v131 = vsel %vm90, %v79, 0
    %v134 = vsel %vm90, %v80, 0
    %v137 = vsel %vm90, %v81, 0
    %139 = vmatpush.msra.mxu0 0.0
    %140 = vmatpush.msra.mxu0 0.0
    %141 = vmatpush.msra.mxu0 0.0
    %142 = vmatpush.msra.mxu0 0.0
    %143 = vmatpush.msra.mxu0 0.0
    %144 = vmatpush.msra.mxu0 0.0
    %145 = vmatpush.msra.mxu0 0.0
    %146 = vmatpush.msra.mxu0 0.0
    %147 = vmatpush.msra.mxu0 0.0
    %148 = vmatpush.msra.mxu0 0.0
    %149 = vmatpush.msra.mxu0 0.0
    %150 = vmatpush.msra.mxu0 0.0
    %151 = vmatpush.msra.mxu0 %v85
    %152 = vmatpush.msra.mxu0 %v84
    %153 = vmatpush.msra.mxu0 %v83
    %154 = vmatpush.msra.mxu0 %v82
    %155 = vmatmul.f32.gmra.mxu0 %v92
    %v156 = vpop.f32.mrf.mxu0
    %v157 = vadd.f32 %v88, %v156
    %158 = vmatmul.f32.gmra.mxu0 %v95
    %v159 = vpop.f32.mrf.mxu0
    %v160 = vadd.f32 %v88, %v159
    %161 = vmatmul.f32.gmra.mxu0 %v98
    %v162 = vpop.f32.mrf.mxu0
    %v163 = vadd.f32 %v88, %v162
    %164 = vmatmul.f32.gmra.mxu0 %v101
    %v165 = vpop.f32.mrf.mxu0
    %v166 = vadd.f32 %v88, %v165
    %167 = vmatmul.f32.gmra.mxu0 %v104
    %v168 = vpop.f32.mrf.mxu0
    %v169 = vadd.f32 %v88, %v168
    %170 = vmatmul.f32.gmra.mxu0 %v107
    %v171 = vpop.f32.mrf.mxu0
    %v172 = vadd.f32 %v88, %v171
    %173 = vmatmul.f32.gmra.mxu0 %v110
    %v174 = vpop.f32.mrf.mxu0
    %v175 = vadd.f32 %v88, %v174
    %176 = vmatmul.f32.gmra.mxu0 %v113
    %v177 = vpop.f32.mrf.mxu0
    %v178 = vadd.f32 %v88, %v177
    %179 = vmatmul.f32.gmra.mxu0 %v116
    %v180 = vpop.f32.mrf.mxu0
    %v181 = vadd.f32 %v88, %v180
    %182 = vmatmul.f32.gmra.mxu0 %v119
    %v183 = vpop.f32.mrf.mxu0
    %v184 = vadd.f32 %v88, %v183
    %185 = vmatmul.f32.gmra.mxu0 %v122
    %v186 = vpop.f32.mrf.mxu0
    %v187 = vadd.f32 %v88, %v186
    %188 = vmatmul.f32.gmra.mxu0 %v125
    %v189 = vpop.f32.mrf.mxu0
    %v190 = vadd.f32 %v88, %v189
    %191 = vmatmul.f32.gmra.mxu0 %v128
    %v192 = vpop.f32.mrf.mxu0
    %v193 = vadd.f32 %v88, %v192
    %194 = vmatmul.f32.gmra.mxu0 %v131
    %v195 = vpop.f32.mrf.mxu0
    %v196 = vadd.f32 %v88, %v195
    %197 = vmatmul.f32.gmra.mxu0 %v134
    %v198 = vpop.f32.mrf.mxu0
    %v199 = vadd.f32 %v88, %v198
    %200 = vmatmul.f32.gmra.mxu0 %v137
    %v201 = vpop.f32.mrf.mxu0
    %v202 = vadd.f32 %v88, %v201
    %203 = vdwg.mxu0
    %v204 = vmax.f32 %v157, 0.0
    %v205 = vmax.f32 %v160, 0.0
    %v206 = vmax.f32 %v163, 0.0
    %v207 = vmax.f32 %v166, 0.0
    %v208 = vmax.f32 %v169, 0.0
    %v209 = vmax.f32 %v172, 0.0
    %v210 = vmax.f32 %v175, 0.0
    %v211 = vmax.f32 %v178, 0.0
    %v212 = vmax.f32 %v181, 0.0
    %v213 = vmax.f32 %v184, 0.0
    %v214 = vmax.f32 %v187, 0.0
    %v215 = vmax.f32 %v190, 0.0
    %v216 = vmax.f32 %v193, 0.0
    %v217 = vmax.f32 %v196, 0.0
    %v218 = vmax.f32 %v199, 0.0
    %v219 = vmax.f32 %v202, 0.0
    %v220 = vand.u32 2147483647, %v157
    %v221 = vand.u32 2147483647, %v160
    %v222 = vand.u32 2147483647, %v163
    %v223 = vand.u32 2147483647, %v166
    %v224 = vand.u32 2147483647, %v169
    %v225 = vand.u32 2147483647, %v172
    %v226 = vand.u32 2147483647, %v175
    %v227 = vand.u32 2147483647, %v178
    %v228 = vand.u32 2147483647, %v181
    %v229 = vand.u32 2147483647, %v184
    %v230 = vand.u32 2147483647, %v187
    %v231 = vand.u32 2147483647, %v190
    %v232 = vand.u32 2147483647, %v193
    %v233 = vand.u32 2147483647, %v196
    %v234 = vand.u32 2147483647, %v199
    %v235 = vand.u32 2147483647, %v202
    %v236 = vsub.f32 0.0, %v220
    %v237 = vsub.f32 0.0, %v221
    %v238 = vsub.f32 0.0, %v222
    %v239 = vsub.f32 0.0, %v223
    %v240 = vsub.f32 0.0, %v224
    %v241 = vsub.f32 0.0, %v225
    %v242 = vsub.f32 0.0, %v226
    %v243 = vsub.f32 0.0, %v227
    %v244 = vsub.f32 0.0, %v228
    %v245 = vsub.f32 0.0, %v229
    %v246 = vsub.f32 0.0, %v230
    %v247 = vsub.f32 0.0, %v231
    %v248 = vsub.f32 0.0, %v232
    %v249 = vsub.f32 0.0, %v233
    %v250 = vsub.f32 0.0, %v234
    %v251 = vsub.f32 0.0, %v235
    %v252 = vmul.f32 %v236, 1.442695
    %v253 = vpow.pop %v252
    %v254 = vmul.f32 %v237, 1.442695
    %v255 = vpow.pop %v254
    %v256 = vmul.f32 %v238, 1.442695
    %v257 = vpow.pop %v256
    %v258 = vmul.f32 %v239, 1.442695
    %v259 = vpow.pop %v258
    %v260 = vmul.f32 %v240, 1.442695
    %v261 = vpow.pop %v260
    %v262 = vmul.f32 %v241, 1.442695
    %v263 = vpow.pop %v262
    %v264 = vmul.f32 %v242, 1.442695
    %v265 = vpow.pop %v264
    %v266 = vmul.f32 %v243, 1.442695
    %v267 = vpow.pop %v266
    %v268 = vmul.f32 %v244, 1.442695
    %v269 = vpow.pop %v268
    %v270 = vmul.f32 %v245, 1.442695
    %v271 = vpow.pop %v270
    %v272 = vmul.f32 %v246, 1.442695
    %v273 = vpow.pop %v272
    %v274 = vmul.f32 %v247, 1.442695
    %v275 = vpow.pop %v274
    %v276 = vmul.f32 %v248, 1.442695
    %v277 = vpow.pop %v276
    %v278 = vmul.f32 %v249, 1.442695
    %v279 = vpow.pop %v278
    %v280 = vmul.f32 %v250, 1.442695
    %v281 = vpow.pop %v280
    %v282 = vmul.f32 %v251, 1.442695
    %v283 = vpow.pop %v282
    %v284 = vadd.f32 %v253, 1.0
    %v285 = vlog2.pop %v284
    %v286 = vmul.f32 %v285, 0.6931472
    %v287 = vmul.f32 -0.5, %v253
    %v288 = vadd.f32 %v287, 1.0
    %v289 = vmul.f32 %v288, %v253
    %v290 = vand.u32 2147483647, %v253
    %vm291 = vcmp.lt.f32.partialorder %v290, 0.0004427343
    %v292 = vsel %vm291, %v289, %v286
    %v293 = vadd.f32 %v255, 1.0
    %v294 = vlog2.pop %v293
    %v295 = vmul.f32 %v294, 0.6931472
    %v296 = vmul.f32 -0.5, %v255
    %v297 = vadd.f32 %v296, 1.0
    %v298 = vmul.f32 %v297, %v255
    %v299 = vand.u32 2147483647, %v255
    %vm300 = vcmp.lt.f32.partialorder %v299, 0.0004427343
    %v301 = vsel %vm300, %v298, %v295
    %v302 = vadd.f32 %v257, 1.0
    %v303 = vlog2.pop %v302
    %v304 = vmul.f32 %v303, 0.6931472
    %v305 = vmul.f32 -0.5, %v257
    %v306 = vadd.f32 %v305, 1.0
    %v307 = vmul.f32 %v306, %v257
    %v308 = vand.u32 2147483647, %v257
    %vm309 = vcmp.lt.f32.partialorder %v308, 0.0004427343
    %v310 = vsel %vm309, %v307, %v304
    %v311 = vadd.f32 %v259, 1.0
    %v312 = vlog2.pop %v311
    %v313 = vmul.f32 %v312, 0.6931472
    %v314 = vmul.f32 -0.5, %v259
    %v315 = vadd.f32 %v314, 1.0
    %v316 = vmul.f32 %v315, %v259
    %v317 = vand.u32 2147483647, %v259
    %vm318 = vcmp.lt.f32.partialorder %v317, 0.0004427343
    %v319 = vsel %vm318, %v316, %v313
    %v320 = vadd.f32 %v261, 1.0
    %v321 = vlog2.pop %v320
    %v322 = vmul.f32 %v321, 0.6931472
    %v323 = vmul.f32 -0.5, %v261
    %v324 = vadd.f32 %v323, 1.0
    %v325 = vmul.f32 %v324, %v261
    %v326 = vand.u32 2147483647, %v261
    %vm327 = vcmp.lt.f32.partialorder %v326, 0.0004427343
    %v328 = vsel %vm327, %v325, %v322
    %v329 = vadd.f32 %v263, 1.0
    %v330 = vlog2.pop %v329
    %v331 = vmul.f32 %v330, 0.6931472
    %v332 = vmul.f32 -0.5, %v263
    %v333 = vadd.f32 %v332, 1.0
    %v334 = vmul.f32 %v333, %v263
    %v335 = vand.u32 2147483647, %v263
    %vm336 = vcmp.lt.f32.partialorder %v335, 0.0004427343
    %v337 = vsel %vm336, %v334, %v331
    %v338 = vadd.f32 %v265, 1.0
    %v339 = vlog2.pop %v338
    %v340 = vmul.f32 %v339, 0.6931472
    %v341 = vmul.f32 -0.5, %v265
    %v342 = vadd.f32 %v341, 1.0
    %v343 = vmul.f32 %v342, %v265
    %v344 = vand.u32 2147483647, %v265
    %vm345 = vcmp.lt.f32.partialorder %v344, 0.0004427343
    %v346 = vsel %vm345, %v343, %v340
    %v347 = vadd.f32 %v267, 1.0
    %v348 = vlog2.pop %v347
    %v349 = vmul.f32 %v348, 0.6931472
    %v350 = vmul.f32 -0.5, %v267
    %v351 = vadd.f32 %v350, 1.0
    %v352 = vmul.f32 %v351, %v267
    %v353 = vand.u32 2147483647, %v267
    %vm354 = vcmp.lt.f32.partialorder %v353, 0.0004427343
    %v355 = vsel %vm354, %v352, %v349
    %v356 = vadd.f32 %v269, 1.0
    %v357 = vlog2.pop %v356
    %v358 = vmul.f32 %v357, 0.6931472
    %v359 = vmul.f32 -0.5, %v269
    %v360 = vadd.f32 %v359, 1.0
    %v361 = vmul.f32 %v360, %v269
    %v362 = vand.u32 2147483647, %v269
    %vm363 = vcmp.lt.f32.partialorder %v362, 0.0004427343
    %v364 = vsel %vm363, %v361, %v358
    %v365 = vadd.f32 %v271, 1.0
    %v366 = vlog2.pop %v365
    %v367 = vmul.f32 %v366, 0.6931472
    %v368 = vmul.f32 -0.5, %v271
    %v369 = vadd.f32 %v368, 1.0
    %v370 = vmul.f32 %v369, %v271
    %v371 = vand.u32 2147483647, %v271
    %vm372 = vcmp.lt.f32.partialorder %v371, 0.0004427343
    %v373 = vsel %vm372, %v370, %v367
    %v374 = vadd.f32 %v273, 1.0
    %v375 = vlog2.pop %v374
    %v376 = vmul.f32 %v375, 0.6931472
    %v377 = vmul.f32 -0.5, %v273
    %v378 = vadd.f32 %v377, 1.0
    %v379 = vmul.f32 %v378, %v273
    %v380 = vand.u32 2147483647, %v273
    %vm381 = vcmp.lt.f32.partialorder %v380, 0.0004427343
    %v382 = vsel %vm381, %v379, %v376
    %v383 = vadd.f32 %v275, 1.0
    %v384 = vlog2.pop %v383
    %v385 = vmul.f32 %v384, 0.6931472
    %v386 = vmul.f32 -0.5, %v275
    %v387 = vadd.f32 %v386, 1.0
    %v388 = vmul.f32 %v387, %v275
    %v389 = vand.u32 2147483647, %v275
    %vm390 = vcmp.lt.f32.partialorder %v389, 0.0004427343
    %v391 = vsel %vm390, %v388, %v385
    %v392 = vadd.f32 %v277, 1.0
    %v393 = vlog2.pop %v392
    %v394 = vmul.f32 %v393, 0.6931472
    %v395 = vmul.f32 -0.5, %v277
    %v396 = vadd.f32 %v395, 1.0
    %v397 = vmul.f32 %v396, %v277
    %v398 = vand.u32 2147483647, %v277
    %vm399 = vcmp.lt.f32.partialorder %v398, 0.0004427343
    %v400 = vsel %vm399, %v397, %v394
    %v401 = vadd.f32 %v279, 1.0
    %v402 = vlog2.pop %v401
    %v403 = vmul.f32 %v402, 0.6931472
    %v404 = vmul.f32 -0.5, %v279
    %v405 = vadd.f32 %v404, 1.0
    %v406 = vmul.f32 %v405, %v279
    %v407 = vand.u32 2147483647, %v279
    %vm408 = vcmp.lt.f32.partialorder %v407, 0.0004427343
    %v409 = vsel %vm408, %v406, %v403
    %v410 = vadd.f32 %v281, 1.0
    %v411 = vlog2.pop %v410
    %v412 = vmul.f32 %v411, 0.6931472
    %v413 = vmul.f32 -0.5, %v281
    %v414 = vadd.f32 %v413, 1.0
    %v415 = vmul.f32 %v414, %v281
    %v416 = vand.u32 2147483647, %v281
    %vm417 = vcmp.lt.f32.partialorder %v416, 0.0004427343
    %v418 = vsel %vm417, %v415, %v412
    %v419 = vadd.f32 %v283, 1.0
    %v420 = vlog2.pop %v419
    %v421 = vmul.f32 %v420, 0.6931472
    %v422 = vmul.f32 -0.5, %v283
    %v423 = vadd.f32 %v422, 1.0
    %v424 = vmul.f32 %v423, %v283
    %v425 = vand.u32 2147483647, %v283
    %vm426 = vcmp.lt.f32.partialorder %v425, 0.0004427343
    %v427 = vsel %vm426, %v424, %v421
    %v428 = vadd.f32 %v204, %v292
    %v429 = vadd.f32 %v205, %v301
    %v430 = vadd.f32 %v206, %v310
    %v431 = vadd.f32 %v207, %v319
    %v432 = vadd.f32 %v208, %v328
    %v433 = vadd.f32 %v209, %v337
    %v434 = vadd.f32 %v210, %v346
    %v435 = vadd.f32 %v211, %v355
    %v436 = vadd.f32 %v212, %v364
    %v437 = vadd.f32 %v213, %v373
    %v438 = vadd.f32 %v214, %v382
    %v439 = vadd.f32 %v215, %v391
    %v440 = vadd.f32 %v216, %v400
    %v441 = vadd.f32 %v217, %v409
    %v442 = vadd.f32 %v218, %v418
    %v443 = vadd.f32 %v219, %v427
    %v444 = vsub.f32 %v428, 0.6931472
    %v445 = vsub.f32 %v429, 0.6931472
    %v446 = vsub.f32 %v430, 0.6931472
    %v447 = vsub.f32 %v431, 0.6931472
    %v448 = vsub.f32 %v432, 0.6931472
    %v449 = vsub.f32 %v433, 0.6931472
    %v450 = vsub.f32 %v434, 0.6931472
    %v451 = vsub.f32 %v435, 0.6931472
    %v452 = vsub.f32 %v436, 0.6931472
    %v453 = vsub.f32 %v437, 0.6931472
    %v454 = vsub.f32 %v438, 0.6931472
    %v455 = vsub.f32 %v439, 0.6931472
    %v456 = vsub.f32 %v440, 0.6931472
    %v457 = vsub.f32 %v441, 0.6931472
    %v458 = vsub.f32 %v442, 0.6931472
    %v459 = vsub.f32 %v443, 0.6931472
    %v460 = vld [vmem:[%s4] sm:$0xff]
    %v461 = vld [vmem:[%s4 + $0x8] sm:$0xff]
    %v462 = vld [vmem:[%s5] sm:$0x1]
    %v464 = vperm.slane %v462, 0
    %vm466 = vcmask 130048
    %v468 = vsel %vm466, %v444, 0
    %v471 = vsel %vm466, %v445, 0
    %v474 = vsel %vm466, %v446, 0
    %v477 = vsel %vm466, %v447, 0
    %v480 = vsel %vm466, %v448, 0
    %v483 = vsel %vm466, %v449, 0
    %v486 = vsel %vm466, %v450, 0
    %v489 = vsel %vm466, %v451, 0
    %v492 = vsel %vm466, %v452, 0
    %v495 = vsel %vm466, %v453, 0
    %v498 = vsel %vm466, %v454, 0
    %v501 = vsel %vm466, %v455, 0
    %v504 = vsel %vm466, %v456, 0
    %v507 = vsel %vm466, %v457, 0
    %v510 = vsel %vm466, %v458, 0
    %v513 = vsel %vm466, %v459, 0
    %515 = vmatpush.msra.mxu0 0.0
    %516 = vmatpush.msra.mxu0 0.0
    %517 = vmatpush.msra.mxu0 0.0
    %518 = vmatpush.msra.mxu0 0.0
    %519 = vmatpush.msra.mxu0 0.0
    %520 = vmatpush.msra.mxu0 0.0
    %521 = vmatpush.msra.mxu0 0.0
    %522 = vmatpush.msra.mxu0 0.0
    %523 = vmatpush.msra.mxu0 0.0
    %524 = vmatpush.msra.mxu0 0.0
    %525 = vmatpush.msra.mxu0 0.0
    %526 = vmatpush.msra.mxu0 0.0
    %527 = vmatpush.msra.mxu0 0.0
    %528 = vmatpush.msra.mxu0 0.0
    %529 = vmatpush.msra.mxu0 %v461
    %530 = vmatpush.msra.mxu0 %v460
    %531 = vmatmul.f32.gmra.mxu0 %v468
    %v532 = vpop.f32.mrf.mxu0
    %v533 = vadd.f32 %v464, %v532
    %534 = vmatmul.f32.gmra.mxu0 %v471
    %v535 = vpop.f32.mrf.mxu0
    %v536 = vadd.f32 %v464, %v535
    %537 = vmatmul.f32.gmra.mxu0 %v474
    %v538 = vpop.f32.mrf.mxu0
    %v539 = vadd.f32 %v464, %v538
    %540 = vmatmul.f32.gmra.mxu0 %v477
    %v541 = vpop.f32.mrf.mxu0
    %v542 = vadd.f32 %v464, %v541
    %543 = vmatmul.f32.gmra.mxu0 %v480
    %v544 = vpop.f32.mrf.mxu0
    %v545 = vadd.f32 %v464, %v544
    %546 = vmatmul.f32.gmra.mxu0 %v483
    %v547 = vpop.f32.mrf.mxu0
    %v548 = vadd.f32 %v464, %v547
    %549 = vmatmul.f32.gmra.mxu0 %v486
    %v550 = vpop.f32.mrf.mxu0
    %v551 = vadd.f32 %v464, %v550
    %552 = vmatmul.f32.gmra.mxu0 %v489
    %v553 = vpop.f32.mrf.mxu0
    %v554 = vadd.f32 %v464, %v553
    %555 = vmatmul.f32.gmra.mxu0 %v492
    %v556 = vpop.f32.mrf.mxu0
    %v557 = vadd.f32 %v464, %v556
    %558 = vmatmul.f32.gmra.mxu0 %v495
    %v559 = vpop.f32.mrf.mxu0
    %v560 = vadd.f32 %v464, %v559
    %561 = vmatmul.f32.gmra.mxu0 %v498
    %v562 = vpop.f32.mrf.mxu0
    %v563 = vadd.f32 %v464, %v562
    %564 = vmatmul.f32.gmra.mxu0 %v501
    %v565 = vpop.f32.mrf.mxu0
    %v566 = vadd.f32 %v464, %v565
    %567 = vmatmul.f32.gmra.mxu0 %v504
    %v568 = vpop.f32.mrf.mxu0
    %v569 = vadd.f32 %v464, %v568
    %570 = vmatmul.f32.gmra.mxu0 %v507
    %v571 = vpop.f32.mrf.mxu0
    %v572 = vadd.f32 %v464, %v571
    %573 = vmatmul.f32.gmra.mxu0 %v510
    %v574 = vpop.f32.mrf.mxu0
    %v575 = vadd.f32 %v464, %v574
    %576 = vmatmul.f32.gmra.mxu0 %v513
    %v577 = vpop.f32.mrf.mxu0
    %v578 = vadd.f32 %v464, %v577
    %579 = vdwg.mxu0
    %v580 = vlaneseq
    %v581 = vshrl.u32 %v580, 7
    %v582 = vld [vmem:[%s50] sm:$0x1]
    %v583 = vperm.slane %v582, 0
    %vm584 = vcmp.eq.s32.totalorder %v581, %v583
    %v585 = vsel %vm584, 1, 0
    %v586 = vcvt.s32.f32 %v585
    %v587 = vld [vmem:[#allocation2] sm:$0xf]
    %588 = vmatpush.msra.mxu0 %v578
    %589 = vmatpush.msra.mxu0 %v575
    %590 = vmatpush.msra.mxu0 %v572
    %591 = vmatpush.msra.mxu0 %v569
    %592 = vmatpush.msra.mxu0 %v566
    %593 = vmatpush.msra.mxu0 %v563
    %594 = vmatpush.msra.mxu0 %v560
    %595 = vmatpush.msra.mxu0 %v557
    %596 = vmatpush.msra.mxu0 %v554
    %597 = vmatpush.msra.mxu0 %v551
    %598 = vmatpush.msra.mxu0 %v548
    %599 = vmatpush.msra.mxu0 %v545
    %600 = vmatpush.msra.mxu0 %v542
    %601 = vmatpush.msra.mxu0 %v539
    %602 = vmatpush.msra.mxu0 %v536
    %603 = vmatpush.msra.mxu0 %v533
    %604 = vmatmul.f32.gmra.mxu0 %v586
    %v605 = vpop.f32.mrf.mxu0
    %v606 = vadd.f32 0.0, %v605
    %607 = vdwg.mxu0
    %v608 = vadd.f32 %v587, %v606
    %vm609 = vcmask 60416
    %610 = vst.msk [vmem:[#allocation2] sm:$0xf] %vm609, %v608
    // Predicated region
    $region30: #{tpu_custom_call.1} parent=1 // pred_check
      _
    $region31: #{tpu_custom_call.1} parent=1 // pred_check_branch
      %612 = sbr.rel (0) target = $region33
    $region32: #{tpu_custom_call.1} parent=1 // pred_region
      %614 = vsyncadd [#allocation3], 0
      %s616 = sshll.u32 [#allocation2], 4
      %s617 = int_to_ptr.vmem [resolvable:$true] %s616
      %s618 = sshll.u32 %s6, 4
      %s619 = int_to_ptr.hbm [resolvable:$true] %s618
      %621 = dma.vmem_to_hbm [thread:$0]  %s617, 64, %s619, [#allocation3]
    $region33: #{tpu_custom_call.1} parent=1 // pred_fallthru
      _
    // Predicated region
    $region34: #{tpu_custom_call.1} parent=1 // pred_check
      _
    $region35: #{tpu_custom_call.1} parent=1 // pred_check_branch
      %623 = sbr.rel (0) target = $region37
    $region36: #{tpu_custom_call.1} parent=1 // pred_region
      %625 = dma.done [#allocation3], 64
    $region37: #{tpu_custom_call.1} parent=1 // pred_fallthru
      _
    %626 = vsyncpa [#allocation3], 1

</llo_original>
